<compile_context>
chip_gen: v5e
topology: v5e:2x2
jax: 0.10.0
libtpu: 0.0.40
codegen_flags: <defaults>
</compile_context>

<pallas_src>
import functools

import jax
import jax.numpy as jnp
from jax.experimental import pallas as pl
from jax.experimental.pallas import tpu as pltpu

EPS = 1e-5
HIGH = jax.lax.Precision.HIGHEST  # only used by the pure-JAX reference


# ----------------------------------------------------------------------------
# Fused bottleneck kernel: one batch image per grid step, channels-major.
# ----------------------------------------------------------------------------
def _bottleneck_kernel(x_ref, m_ref, w1_ref, w2_ref, w3_ref,
                       b1_ref, b2_ref, b3_ref,
                       o_ref, p_ref, t2_ref,
                       *, groups, cpg, shifts):
    x2d = x_ref[0]                                            # (cin, hw) bf16

    # ---- conv1 (1x1) + BN1 + ReLU  (BN scale pre-folded into w1) -----------
    y1 = jnp.dot(w1_ref[...], x2d, preferred_element_type=jnp.float32)
    y1 = jnp.maximum(y1 + b1_ref[...], 0.0)                   # (C, hw) f32

    # ---- build the 9 shifted+masked tap planes ONCE for all channels -------
    # The 3x3 halo is handled on the flattened spatial lane dim with a static
    # lane rotation (pltpu.roll) + a precomputed validity mask, so there is no
    # padded scratch, no memset, and no lane-dim-changing reshape.
    for t, shift in enumerate(shifts):
        shifted = pltpu.roll(y1, shift, 1) if shift else y1
        tap = (shifted * m_ref[t]).astype(p_ref.dtype)        # (C, hw) bf16
        for g in range(groups):                               # static slice stores
            p_ref[g, t * cpg:(t + 1) * cpg, :] = tap[g * cpg:(g + 1) * cpg, :]

    # ---- grouped 3x3 conv + BN2 + ReLU  (im2col: K = 9*cpg per group) ------
    @pl.loop(0, groups)
    def _(g):
        yg = jnp.dot(w2_ref[g], p_ref[g], preferred_element_type=jnp.float32)
        t2_ref[g] = jnp.maximum(yg + b2_ref[g], 0.0).astype(t2_ref.dtype)

    # ---- conv3 (1x1) + BN3 + residual add + ReLU ----------------------------
    a2 = jnp.concatenate([t2_ref[g] for g in range(groups)], axis=0)  # (C, hw)
    y3 = jnp.dot(w3_ref[...], a2, preferred_element_type=jnp.float32)
    y3 = y3 + b3_ref[...] + x2d.astype(jnp.float32)           # identity (downsample=None)
    o_ref[0] = jnp.maximum(y3, 0.0).astype(o_ref.dtype)


def bottleneck_forward(x_nchw, params, *, stride=1, dilation=1):
    """Forward pass matching _Bottleneck.forward (eval-mode BN, downsample=None).

    Takes / returns NCHW; computation is bf16 on the MXU with f32 accumulation,
    output is returned in bf16 (cast at the caller if f32 is required).
    """
    n, cin, h, w = x_nchw.shape
    groups = params["groups"]
    channels, cexp = params["channels"], params["c_exp"]
    cpg = channels // groups
    pad = dilation
    ho = (h + 2 * pad - dilation * 2 - 1) // stride + 1
    wo = (w + 2 * pad - dilation * 2 - 1) // stride + 1

    # downsample=None -> residual shapes must match the block output.
    assert stride == 1 and (ho, wo) == (h, w) and cin == cexp, \
        "downsample path not implemented"   # TODO(synk): downsample module
    hw = h * w

    # Static per-tap lane shifts + validity masks for the 3x3 conv, computed
    # once in the wrapper (masks passed as a tiny constant input so the kernel
    # needs no in-kernel iota / div / mod).
    ii = jnp.arange(h)[:, None]
    jj = jnp.arange(w)[None, :]
    shifts, masks = [], []
    for dh in range(3):
        rdh = dh * dilation - pad
        for dw in range(3):
            rdw = dw * dilation - pad
            valid = ((ii + rdh >= 0) & (ii + rdh < h) &
                     (jj + rdw >= 0) & (jj + rdw < w))
            masks.append(valid.reshape(1, hw).astype(jnp.float32))
            shifts.append((-(rdh * w + rdw)) % hw)
    masks = jnp.stack(masks, axis=0)                          # (9, 1, hw) f32

    # Fold BN scales into the conv weights (f32 first, then bf16 for the MXU);
    # only the bias-add + ReLU stay in the kernel epilogues.
    w1t = (params["w1"].T * params["s1"][:, None]).astype(jnp.bfloat16)      # (C, cin)
    w2t = jnp.transpose(params["w2"], (0, 4, 1, 2, 3)).reshape(groups, cpg, 9 * cpg)
    w2t = (w2t * params["s2"].reshape(groups, cpg)[:, :, None]).astype(jnp.bfloat16)
    w3t = (params["w3"].T * params["s3"][:, None]).astype(jnp.bfloat16)      # (cexp, C)
    b1 = params["b1"].reshape(channels, 1).astype(jnp.float32)
    b2 = params["b2"].reshape(groups, cpg, 1).astype(jnp.float32)
    b3 = params["b3"].reshape(cexp, 1).astype(jnp.float32)

    # NCHW kept as-is; flattening H,W is a free reshape.  bf16 HBM I/O.
    x3d = x_nchw.reshape(n, cin, hw).astype(jnp.bfloat16)

    kernel = functools.partial(
        _bottleneck_kernel, groups=groups, cpg=cpg, shifts=tuple(shifts))

    out = pl.pallas_call(
        kernel,
        out_shape=jax.ShapeDtypeStruct((n, cexp, hw), jnp.bfloat16),
        grid_spec=pltpu.PrefetchScalarGridSpec(
            num_scalar_prefetch=0,
            grid=(n,),
            in_specs=[
                pl.BlockSpec((1, cin, hw), lambda b: (b, 0, 0)),
                pl.BlockSpec((9, 1, hw), lambda b: (0, 0, 0)),
                pl.BlockSpec((channels, cin), lambda b: (0, 0)),
                pl.BlockSpec((groups, cpg, 9 * cpg), lambda b: (0, 0, 0)),
                pl.BlockSpec((cexp, channels), lambda b: (0, 0)),
                pl.BlockSpec((channels, 1), lambda b: (0, 0)),
                pl.BlockSpec((groups, cpg, 1), lambda b: (0, 0, 0)),
                pl.BlockSpec((cexp, 1), lambda b: (0, 0)),
            ],
            out_specs=pl.BlockSpec((1, cexp, hw), lambda b: (b, 0, 0)),
            scratch_shapes=[
                pltpu.VMEM((groups, 9 * cpg, hw), jnp.bfloat16),   # im2col patches
                pltpu.VMEM((groups, cpg, hw), jnp.bfloat16),       # conv2 output
            ]),
        compiler_params=pltpu.CompilerParams(
            dimension_semantics=("parallel",)),
    )(x3d, masks, w1t, w2t, w3t, b1, b2, b3)

    return out.reshape(n, cexp, ho, wo)                       # NCHW, bf16


# ----------------------------------------------------------------------------
# Parameters (eval-mode BN folded into scale/bias)
# ----------------------------------------------------------------------------
def fold_bn(gamma, beta, mean, var):
    scale = gamma / jnp.sqrt(var + EPS)
    bias = beta - mean * scale
    return scale, bias


def init_params(key, in_channels, out_channels, groups, base_channels):
    expansion = 4
    channels = int(out_channels * (base_channels / 64.0)) * groups
    c_exp = out_channels * expansion
    cpg = channels // groups
    ks = jax.random.split(key, 6)

    w1 = 0.1 * jax.random.normal(ks[0], (in_channels, channels), jnp.float32)
    # conv2 weights: (groups, kh, kw, cin_per_group, cout_per_group)
    w2 = 0.1 * jax.random.normal(ks[1], (groups, 3, 3, cpg, cpg), jnp.float32)
    w3 = 0.1 * jax.random.normal(ks[2], (channels, c_exp), jnp.float32)

    def bn_params(k, c):
        k1, k2, k3 = jax.random.split(k, 3)
        gamma = 1.0 + 0.1 * jax.random.normal(k1, (c,), jnp.float32)
        beta = 0.1 * jax.random.normal(k2, (c,), jnp.float32)
        mean = 0.1 * jax.random.normal(k3, (c,), jnp.float32)
        var = jnp.ones((c,), jnp.float32) * 0.9
        return fold_bn(gamma, beta, mean, var)

    s1, b1 = bn_params(ks[3], channels)
    s2, b2 = bn_params(ks[4], channels)
    s3, b3 = bn_params(ks[5], c_exp)
    return dict(w1=w1, w2=w2, w3=w3, s1=s1, b1=b1, s2=s2, b2=b2, s3=s3, b3=b3,
                channels=channels, c_exp=c_exp, groups=groups)


# ----------------------------------------------------------------------------
# Pure-JAX f32 reference (XLA convs) for a sanity check.
# ----------------------------------------------------------------------------
def reference_forward(x_nchw, params, *, stride=1, dilation=1):
    x = jnp.transpose(x_nchw, (0, 2, 3, 1)).astype(jnp.float32)
    n, h, w, cin = x.shape
    groups = params["groups"]
    channels, c_exp = params["channels"], params["c_exp"]
    cpg = channels // groups

    y = jnp.maximum(
        jnp.dot(x.reshape(-1, cin), params["w1"], precision=HIGH)
        * params["s1"] + params["b1"], 0.0).reshape(n, h, w, channels)

    w_hwio = jnp.transpose(params["w2"], (1, 2, 3, 0, 4)).reshape(
        3, 3, cpg, channels)
    y = jax.lax.conv_general_dilated(
        y, w_hwio, window_strides=(stride, stride),
        padding=[(dilation, dilation), (dilation, dilation)],
        rhs_dilation=(dilation, dilation),
        dimension_numbers=("NHWC", "HWIO", "NHWC"),
        feature_group_count=groups, precision=HIGH)
    y = jnp.maximum(y * params["s2"] + params["b2"], 0.0)

    _, ho, wo, _ = y.shape
    y = jnp.dot(y.reshape(-1, channels), params["w3"], precision=HIGH) \
        * params["s3"] + params["b3"]
    y = jnp.maximum(y + x.reshape(-1, cin), 0.0).reshape(n, ho, wo, c_exp)
    return jnp.transpose(y, (0, 3, 1, 2))


if __name__ == "__main__":
    # out_channels=4, expansion=4 -> in_channels=16 so the downsample=None
    # residual add is valid; groups=2 (ResNeXt-style), stride=1.
    # H=W=16 -> flattened spatial h*w = 256 lanes (lane-dense).
    N, OUT_CH, GROUPS, BASE_CH = 2, 4, 2, 64
    IN_CH = OUT_CH * 4
    H = W = 16
    STRIDE = 1

    key = jax.random.PRNGKey(0)
    kx, kp = jax.random.split(key)
    x = jax.random.normal(kx, (N, IN_CH, H, W), jnp.float32)  # NCHW input
    params = init_params(kp, IN_CH, OUT_CH, GROUPS, BASE_CH)

    for dilation in (1, 2):
        out = jax.block_until_ready(
            bottleneck_forward(x, params, stride=STRIDE, dilation=dilation))
        ref = jax.block_until_ready(
            reference_forward(x, params, stride=STRIDE, dilation=dilation))
        assert out.shape == (N, OUT_CH * 4, H, W), out.shape
        out_f = out.astype(jnp.float32)
        max_err = float(jnp.max(jnp.abs(out_f - ref)))
        # bf16 MXU path + bf16 I/O vs f32 reference -> loosened tolerance.
        assert jnp.allclose(out_f, ref, atol=5e-2, rtol=5e-2), max_err

    print("KERNEL_OK")
</pallas_src>

<mosaic_0001>
module attributes {stable_mosaic.version = 11 : i64} {
  func.func @_bottleneck_kernel(%arg0: i32, %arg1: memref<1x16x256xbf16, #tpu.memory_space<vmem>>, %arg2: memref<9x1x256xf32, #tpu.memory_space<vmem>>, %arg3: memref<8x16xbf16, #tpu.memory_space<vmem>>, %arg4: memref<2x4x36xbf16, #tpu.memory_space<vmem>>, %arg5: memref<16x8xbf16, #tpu.memory_space<vmem>>, %arg6: memref<8x1xf32, #tpu.memory_space<vmem>>, %arg7: memref<2x4x1xf32, #tpu.memory_space<vmem>>, %arg8: memref<16x1xf32, #tpu.memory_space<vmem>>, %arg9: memref<1x16x256xbf16, #tpu.memory_space<vmem>>, %arg10: memref<2x36x256xbf16, #tpu.memory_space<vmem>>, %arg11: memref<2x4x256xbf16, #tpu.memory_space<vmem>>) attributes {dimension_semantics = [#tpu.dimension_semantics<parallel>], iteration_bounds = array<i64: 2>, scalar_prefetch = 0 : i64, scratch_operands = 2 : i64, tpu.core_type = #tpu.core_type<tc>, window_params = [{transform_indices = @transform_0, window_bounds = array<i64: 1, 16, 256>}, {pipeline_mode = #tpu.pipeline_mode<synchronous>, transform_indices = @transform_1, window_bounds = array<i64: 9, 1, 256>}, {pipeline_mode = #tpu.pipeline_mode<synchronous>, transform_indices = @transform_2, window_bounds = array<i64: 8, 16>}, {pipeline_mode = #tpu.pipeline_mode<synchronous>, transform_indices = @transform_3, window_bounds = array<i64: 2, 4, 36>}, {pipeline_mode = #tpu.pipeline_mode<synchronous>, transform_indices = @transform_4, window_bounds = array<i64: 16, 8>}, {pipeline_mode = #tpu.pipeline_mode<synchronous>, transform_indices = @transform_5, window_bounds = array<i64: 8, 1>}, {pipeline_mode = #tpu.pipeline_mode<synchronous>, transform_indices = @transform_6, window_bounds = array<i64: 2, 4, 1>}, {pipeline_mode = #tpu.pipeline_mode<synchronous>, transform_indices = @transform_7, window_bounds = array<i64: 16, 1>}, {transform_indices = @transform_8, window_bounds = array<i64: 1, 16, 256>}]} {
    %c0 = arith.constant 0 : index
    %c0_0 = arith.constant 0 : index
    %c0_1 = arith.constant 0 : index
    %0 = vector.load %arg1[%c0, %c0_0, %c0_1] : memref<1x16x256xbf16, #tpu.memory_space<vmem>>, vector<1x16x256xbf16>
    %1 = vector.shape_cast %0 : vector<1x16x256xbf16> to vector<16x256xbf16>
    %c0_2 = arith.constant 0 : index
    %c0_3 = arith.constant 0 : index
    %2 = vector.load %arg3[%c0_2, %c0_3] : memref<8x16xbf16, #tpu.memory_space<vmem>>, vector<8x16xbf16>
    %cst = arith.constant dense<0.000000e+00> : vector<8x256xf32>
    %3 = tpu.matmul %2, %1, %cst {dimension_numbers = #tpu.dot_dimension_numbers<[1], [0], [0], [1], [0, 0, 1, 1], [], []>} : vector<8x16xbf16>, vector<16x256xbf16>, vector<8x256xf32> -> vector<8x256xf32>
    %c0_4 = arith.constant 0 : index
    %c0_5 = arith.constant 0 : index
    %4 = vector.load %arg6[%c0_4, %c0_5] : memref<8x1xf32, #tpu.memory_space<vmem>>, vector<8x1xf32>
    %5 = vector.broadcast %4 : vector<8x1xf32> to vector<8x256xf32>
    %6 = arith.addf %3, %5 : vector<8x256xf32>
    %cst_6 = arith.constant 0.000000e+00 : f32
    %7 = vector.broadcast %cst_6 : f32 to vector<8x256xf32>
    %8 = arith.maximumf %6, %7 : vector<8x256xf32>
    %c17_i32 = arith.constant 17 : i32
    %9 = tpu.dynamic_rotate %8 by %c17_i32 dim 1 : vector<8x256xf32>, i32 -> vector<8x256xf32>
    %c0_7 = arith.constant 0 : index
    %c0_8 = arith.constant 0 : index
    %c0_9 = arith.constant 0 : index
    %10 = vector.load %arg2[%c0_7, %c0_8, %c0_9] : memref<9x1x256xf32, #tpu.memory_space<vmem>>, vector<1x1x256xf32>
    %11 = vector.shape_cast %10 : vector<1x1x256xf32> to vector<1x256xf32>
    %12 = vector.broadcast %11 : vector<1x256xf32> to vector<8x256xf32>
    %13 = arith.mulf %9, %12 : vector<8x256xf32>
    %14 = arith.truncf %13 : vector<8x256xf32> to vector<8x256xbf16>
    %15 = vector.extract_strided_slice %14 {offsets = [0, 0], sizes = [4, 256], strides = [1, 1]} : vector<8x256xbf16> to vector<4x256xbf16>
    %c0_10 = arith.constant 0 : index
    %c0_11 = arith.constant 0 : index
    %c0_12 = arith.constant 0 : index
    %16 = vector.load %arg10[%c0_10, %c0_11, %c0_12] : memref<2x36x256xbf16, #tpu.memory_space<vmem>>, vector<1x4x256xbf16>
    %17 = vector.shape_cast %16 : vector<1x4x256xbf16> to vector<4x256xbf16>
    %18 = vector.shape_cast %15 : vector<4x256xbf16> to vector<1x4x256xbf16>
    tpu.vector_store %arg10[%c0_10, %c0_11, %c0_12], %18 {strides = array<i32>} : memref<2x36x256xbf16, #tpu.memory_space<vmem>>, vector<1x4x256xbf16>,
    %19 = vector.extract_strided_slice %14 {offsets = [4, 0], sizes = [4, 256], strides = [1, 1]} : vector<8x256xbf16> to vector<4x256xbf16>
    %c1 = arith.constant 1 : index
    %c0_13 = arith.constant 0 : index
    %c0_14 = arith.constant 0 : index
    %20 = vector.load %arg10[%c1, %c0_13, %c0_14] : memref<2x36x256xbf16, #tpu.memory_space<vmem>>, vector<1x4x256xbf16>
    %21 = vector.shape_cast %20 : vector<1x4x256xbf16> to vector<4x256xbf16>
    %22 = vector.shape_cast %19 : vector<4x256xbf16> to vector<1x4x256xbf16>
    tpu.vector_store %arg10[%c1, %c0_13, %c0_14], %22 {strides = array<i32>} : memref<2x36x256xbf16, #tpu.memory_space<vmem>>, vector<1x4x256xbf16>,
    %c16_i32 = arith.constant 16 : i32
    %23 = tpu.dynamic_rotate %8 by %c16_i32 dim 1 : vector<8x256xf32>, i32 -> vector<8x256xf32>
    %c1_15 = arith.constant 1 : index
    %c0_16 = arith.constant 0 : index
    %c0_17 = arith.constant 0 : index
    %24 = vector.load %arg2[%c1_15, %c0_16, %c0_17] : memref<9x1x256xf32, #tpu.memory_space<vmem>>, vector<1x1x256xf32>
    %25 = vector.shape_cast %24 : vector<1x1x256xf32> to vector<1x256xf32>
    %26 = vector.broadcast %25 : vector<1x256xf32> to vector<8x256xf32>
    %27 = arith.mulf %23, %26 : vector<8x256xf32>
    %28 = arith.truncf %27 : vector<8x256xf32> to vector<8x256xbf16>
    %29 = vector.extract_strided_slice %28 {offsets = [0, 0], sizes = [4, 256], strides = [1, 1]} : vector<8x256xbf16> to vector<4x256xbf16>
    %c0_18 = arith.constant 0 : index
    %c4 = arith.constant 4 : index
    %c0_19 = arith.constant 0 : index
    %30 = vector.load %arg10[%c0_18, %c4, %c0_19] : memref<2x36x256xbf16, #tpu.memory_space<vmem>>, vector<1x4x256xbf16>
    %31 = vector.shape_cast %30 : vector<1x4x256xbf16> to vector<4x256xbf16>
    %32 = vector.shape_cast %29 : vector<4x256xbf16> to vector<1x4x256xbf16>
    tpu.vector_store %arg10[%c0_18, %c4, %c0_19], %32 {strides = array<i32>} : memref<2x36x256xbf16, #tpu.memory_space<vmem>>, vector<1x4x256xbf16>,
    %33 = vector.extract_strided_slice %28 {offsets = [4, 0], sizes = [4, 256], strides = [1, 1]} : vector<8x256xbf16> to vector<4x256xbf16>
    %c1_20 = arith.constant 1 : index
    %c4_21 = arith.constant 4 : index
    %c0_22 = arith.constant 0 : index
    %34 = vector.load %arg10[%c1_20, %c4_21, %c0_22] : memref<2x36x256xbf16, #tpu.memory_space<vmem>>, vector<1x4x256xbf16>
    %35 = vector.shape_cast %34 : vector<1x4x256xbf16> to vector<4x256xbf16>
    %36 = vector.shape_cast %33 : vector<4x256xbf16> to vector<1x4x256xbf16>
    tpu.vector_store %arg10[%c1_20, %c4_21, %c0_22], %36 {strides = array<i32>} : memref<2x36x256xbf16, #tpu.memory_space<vmem>>, vector<1x4x256xbf16>,
    %c15_i32 = arith.constant 15 : i32
    %37 = tpu.dynamic_rotate %8 by %c15_i32 dim 1 : vector<8x256xf32>, i32 -> vector<8x256xf32>
    %c2 = arith.constant 2 : index
    %c0_23 = arith.constant 0 : index
    %c0_24 = arith.constant 0 : index
    %38 = vector.load %arg2[%c2, %c0_23, %c0_24] : memref<9x1x256xf32, #tpu.memory_space<vmem>>, vector<1x1x256xf32>
    %39 = vector.shape_cast %38 : vector<1x1x256xf32> to vector<1x256xf32>
    %40 = vector.broadcast %39 : vector<1x256xf32> to vector<8x256xf32>
    %41 = arith.mulf %37, %40 : vector<8x256xf32>
    %42 = arith.truncf %41 : vector<8x256xf32> to vector<8x256xbf16>
    %43 = vector.extract_strided_slice %42 {offsets = [0, 0], sizes = [4, 256], strides = [1, 1]} : vector<8x256xbf16> to vector<4x256xbf16>
    %c0_25 = arith.constant 0 : index
    %c8 = arith.constant 8 : index
    %c0_26 = arith.constant 0 : index
    %44 = vector.load %arg10[%c0_25, %c8, %c0_26] : memref<2x36x256xbf16, #tpu.memory_space<vmem>>, vector<1x4x256xbf16>
    %45 = vector.shape_cast %44 : vector<1x4x256xbf16> to vector<4x256xbf16>
    %46 = vector.shape_cast %43 : vector<4x256xbf16> to vector<1x4x256xbf16>
    tpu.vector_store %arg10[%c0_25, %c8, %c0_26], %46 {strides = array<i32>} : memref<2x36x256xbf16, #tpu.memory_space<vmem>>, vector<1x4x256xbf16>,
    %47 = vector.extract_strided_slice %42 {offsets = [4, 0], sizes = [4, 256], strides = [1, 1]} : vector<8x256xbf16> to vector<4x256xbf16>
    %c1_27 = arith.constant 1 : index
    %c8_28 = arith.constant 8 : index
    %c0_29 = arith.constant 0 : index
    %48 = vector.load %arg10[%c1_27, %c8_28, %c0_29] : memref<2x36x256xbf16, #tpu.memory_space<vmem>>, vector<1x4x256xbf16>
    %49 = vector.shape_cast %48 : vector<1x4x256xbf16> to vector<4x256xbf16>
    %50 = vector.shape_cast %47 : vector<4x256xbf16> to vector<1x4x256xbf16>
    tpu.vector_store %arg10[%c1_27, %c8_28, %c0_29], %50 {strides = array<i32>} : memref<2x36x256xbf16, #tpu.memory_space<vmem>>, vector<1x4x256xbf16>,
    %c1_i32 = arith.constant 1 : i32
    %51 = tpu.dynamic_rotate %8 by %c1_i32 dim 1 : vector<8x256xf32>, i32 -> vector<8x256xf32>
    %c3 = arith.constant 3 : index
    %c0_30 = arith.constant 0 : index
    %c0_31 = arith.constant 0 : index
    %52 = vector.load %arg2[%c3, %c0_30, %c0_31] : memref<9x1x256xf32, #tpu.memory_space<vmem>>, vector<1x1x256xf32>
    %53 = vector.shape_cast %52 : vector<1x1x256xf32> to vector<1x256xf32>
    %54 = vector.broadcast %53 : vector<1x256xf32> to vector<8x256xf32>
    %55 = arith.mulf %51, %54 : vector<8x256xf32>
    %56 = arith.truncf %55 : vector<8x256xf32> to vector<8x256xbf16>
    %57 = vector.extract_strided_slice %56 {offsets = [0, 0], sizes = [4, 256], strides = [1, 1]} : vector<8x256xbf16> to vector<4x256xbf16>
    %c0_32 = arith.constant 0 : index
    %c12 = arith.constant 12 : index
    %c0_33 = arith.constant 0 : index
    %58 = vector.load %arg10[%c0_32, %c12, %c0_33] : memref<2x36x256xbf16, #tpu.memory_space<vmem>>, vector<1x4x256xbf16>
    %59 = vector.shape_cast %58 : vector<1x4x256xbf16> to vector<4x256xbf16>
    %60 = vector.shape_cast %57 : vector<4x256xbf16> to vector<1x4x256xbf16>
    tpu.vector_store %arg10[%c0_32, %c12, %c0_33], %60 {strides = array<i32>} : memref<2x36x256xbf16, #tpu.memory_space<vmem>>, vector<1x4x256xbf16>,
    %61 = vector.extract_strided_slice %56 {offsets = [4, 0], sizes = [4, 256], strides = [1, 1]} : vector<8x256xbf16> to vector<4x256xbf16>
    %c1_34 = arith.constant 1 : index
    %c12_35 = arith.constant 12 : index
    %c0_36 = arith.constant 0 : index
    %62 = vector.load %arg10[%c1_34, %c12_35, %c0_36] : memref<2x36x256xbf16, #tpu.memory_space<vmem>>, vector<1x4x256xbf16>
    %63 = vector.shape_cast %62 : vector<1x4x256xbf16> to vector<4x256xbf16>
    %64 = vector.shape_cast %61 : vector<4x256xbf16> to vector<1x4x256xbf16>
    tpu.vector_store %arg10[%c1_34, %c12_35, %c0_36], %64 {strides = array<i32>} : memref<2x36x256xbf16, #tpu.memory_space<vmem>>, vector<1x4x256xbf16>,
    %c4_37 = arith.constant 4 : index
    %c0_38 = arith.constant 0 : index
    %c0_39 = arith.constant 0 : index
    %65 = vector.load %arg2[%c4_37, %c0_38, %c0_39] : memref<9x1x256xf32, #tpu.memory_space<vmem>>, vector<1x1x256xf32>
    %66 = vector.shape_cast %65 : vector<1x1x256xf32> to vector<1x256xf32>
    %67 = vector.broadcast %66 : vector<1x256xf32> to vector<8x256xf32>
    %68 = arith.mulf %8, %67 : vector<8x256xf32>
    %69 = arith.truncf %68 : vector<8x256xf32> to vector<8x256xbf16>
    %70 = vector.extract_strided_slice %69 {offsets = [0, 0], sizes = [4, 256], strides = [1, 1]} : vector<8x256xbf16> to vector<4x256xbf16>
    %c0_40 = arith.constant 0 : index
    %c16 = arith.constant 16 : index
    %c0_41 = arith.constant 0 : index
    %71 = vector.load %arg10[%c0_40, %c16, %c0_41] : memref<2x36x256xbf16, #tpu.memory_space<vmem>>, vector<1x4x256xbf16>
    %72 = vector.shape_cast %71 : vector<1x4x256xbf16> to vector<4x256xbf16>
    %73 = vector.shape_cast %70 : vector<4x256xbf16> to vector<1x4x256xbf16>
    tpu.vector_store %arg10[%c0_40, %c16, %c0_41], %73 {strides = array<i32>} : memref<2x36x256xbf16, #tpu.memory_space<vmem>>, vector<1x4x256xbf16>,
    %74 = vector.extract_strided_slice %69 {offsets = [4, 0], sizes = [4, 256], strides = [1, 1]} : vector<8x256xbf16> to vector<4x256xbf16>
    %c1_42 = arith.constant 1 : index
    %c16_43 = arith.constant 16 : index
    %c0_44 = arith.constant 0 : index
    %75 = vector.load %arg10[%c1_42, %c16_43, %c0_44] : memref<2x36x256xbf16, #tpu.memory_space<vmem>>, vector<1x4x256xbf16>
    %76 = vector.shape_cast %75 : vector<1x4x256xbf16> to vector<4x256xbf16>
    %77 = vector.shape_cast %74 : vector<4x256xbf16> to vector<1x4x256xbf16>
    tpu.vector_store %arg10[%c1_42, %c16_43, %c0_44], %77 {strides = array<i32>} : memref<2x36x256xbf16, #tpu.memory_space<vmem>>, vector<1x4x256xbf16>,
    %c255_i32 = arith.constant 255 : i32
    %78 = tpu.dynamic_rotate %8 by %c255_i32 dim 1 : vector<8x256xf32>, i32 -> vector<8x256xf32>
    %c5 = arith.constant 5 : index
    %c0_45 = arith.constant 0 : index
    %c0_46 = arith.constant 0 : index
    %79 = vector.load %arg2[%c5, %c0_45, %c0_46] : memref<9x1x256xf32, #tpu.memory_space<vmem>>, vector<1x1x256xf32>
    %80 = vector.shape_cast %79 : vector<1x1x256xf32> to vector<1x256xf32>
    %81 = vector.broadcast %80 : vector<1x256xf32> to vector<8x256xf32>
    %82 = arith.mulf %78, %81 : vector<8x256xf32>
    %83 = arith.truncf %82 : vector<8x256xf32> to vector<8x256xbf16>
    %84 = vector.extract_strided_slice %83 {offsets = [0, 0], sizes = [4, 256], strides = [1, 1]} : vector<8x256xbf16> to vector<4x256xbf16>
    %c0_47 = arith.constant 0 : index
    %c20 = arith.constant 20 : index
    %c0_48 = arith.constant 0 : index
    %85 = vector.load %arg10[%c0_47, %c20, %c0_48] : memref<2x36x256xbf16, #tpu.memory_space<vmem>>, vector<1x4x256xbf16>
    %86 = vector.shape_cast %85 : vector<1x4x256xbf16> to vector<4x256xbf16>
    %87 = vector.shape_cast %84 : vector<4x256xbf16> to vector<1x4x256xbf16>
    tpu.vector_store %arg10[%c0_47, %c20, %c0_48], %87 {strides = array<i32>} : memref<2x36x256xbf16, #tpu.memory_space<vmem>>, vector<1x4x256xbf16>,
    %88 = vector.extract_strided_slice %83 {offsets = [4, 0], sizes = [4, 256], strides = [1, 1]} : vector<8x256xbf16> to vector<4x256xbf16>
    %c1_49 = arith.constant 1 : index
    %c20_50 = arith.constant 20 : index
    %c0_51 = arith.constant 0 : index
    %89 = vector.load %arg10[%c1_49, %c20_50, %c0_51] : memref<2x36x256xbf16, #tpu.memory_space<vmem>>, vector<1x4x256xbf16>
    %90 = vector.shape_cast %89 : vector<1x4x256xbf16> to vector<4x256xbf16>
    %91 = vector.shape_cast %88 : vector<4x256xbf16> to vector<1x4x256xbf16>
    tpu.vector_store %arg10[%c1_49, %c20_50, %c0_51], %91 {strides = array<i32>} : memref<2x36x256xbf16, #tpu.memory_space<vmem>>, vector<1x4x256xbf16>,
    %c241_i32 = arith.constant 241 : i32
    %92 = tpu.dynamic_rotate %8 by %c241_i32 dim 1 : vector<8x256xf32>, i32 -> vector<8x256xf32>
    %c6 = arith.constant 6 : index
    %c0_52 = arith.constant 0 : index
    %c0_53 = arith.constant 0 : index
    %93 = vector.load %arg2[%c6, %c0_52, %c0_53] : memref<9x1x256xf32, #tpu.memory_space<vmem>>, vector<1x1x256xf32>
    %94 = vector.shape_cast %93 : vector<1x1x256xf32> to vector<1x256xf32>
    %95 = vector.broadcast %94 : vector<1x256xf32> to vector<8x256xf32>
    %96 = arith.mulf %92, %95 : vector<8x256xf32>
    %97 = arith.truncf %96 : vector<8x256xf32> to vector<8x256xbf16>
    %98 = vector.extract_strided_slice %97 {offsets = [0, 0], sizes = [4, 256], strides = [1, 1]} : vector<8x256xbf16> to vector<4x256xbf16>
    %c0_54 = arith.constant 0 : index
    %c24 = arith.constant 24 : index
    %c0_55 = arith.constant 0 : index
    %99 = vector.load %arg10[%c0_54, %c24, %c0_55] : memref<2x36x256xbf16, #tpu.memory_space<vmem>>, vector<1x4x256xbf16>
    %100 = vector.shape_cast %99 : vector<1x4x256xbf16> to vector<4x256xbf16>
    %101 = vector.shape_cast %98 : vector<4x256xbf16> to vector<1x4x256xbf16>
    tpu.vector_store %arg10[%c0_54, %c24, %c0_55], %101 {strides = array<i32>} : memref<2x36x256xbf16, #tpu.memory_space<vmem>>, vector<1x4x256xbf16>,
    %102 = vector.extract_strided_slice %97 {offsets = [4, 0], sizes = [4, 256], strides = [1, 1]} : vector<8x256xbf16> to vector<4x256xbf16>
    %c1_56 = arith.constant 1 : index
    %c24_57 = arith.constant 24 : index
    %c0_58 = arith.constant 0 : index
    %103 = vector.load %arg10[%c1_56, %c24_57, %c0_58] : memref<2x36x256xbf16, #tpu.memory_space<vmem>>, vector<1x4x256xbf16>
    %104 = vector.shape_cast %103 : vector<1x4x256xbf16> to vector<4x256xbf16>
    %105 = vector.shape_cast %102 : vector<4x256xbf16> to vector<1x4x256xbf16>
    tpu.vector_store %arg10[%c1_56, %c24_57, %c0_58], %105 {strides = array<i32>} : memref<2x36x256xbf16, #tpu.memory_space<vmem>>, vector<1x4x256xbf16>,
    %c240_i32 = arith.constant 240 : i32
    %106 = tpu.dynamic_rotate %8 by %c240_i32 dim 1 : vector<8x256xf32>, i32 -> vector<8x256xf32>
    %c7 = arith.constant 7 : index
    %c0_59 = arith.constant 0 : index
    %c0_60 = arith.constant 0 : index
    %107 = vector.load %arg2[%c7, %c0_59, %c0_60] : memref<9x1x256xf32, #tpu.memory_space<vmem>>, vector<1x1x256xf32>
    %108 = vector.shape_cast %107 : vector<1x1x256xf32> to vector<1x256xf32>
    %109 = vector.broadcast %108 : vector<1x256xf32> to vector<8x256xf32>
    %110 = arith.mulf %106, %109 : vector<8x256xf32>
    %111 = arith.truncf %110 : vector<8x256xf32> to vector<8x256xbf16>
    %112 = vector.extract_strided_slice %111 {offsets = [0, 0], sizes = [4, 256], strides = [1, 1]} : vector<8x256xbf16> to vector<4x256xbf16>
    %c0_61 = arith.constant 0 : index
    %c28 = arith.constant 28 : index
    %c0_62 = arith.constant 0 : index
    %113 = vector.load %arg10[%c0_61, %c28, %c0_62] : memref<2x36x256xbf16, #tpu.memory_space<vmem>>, vector<1x4x256xbf16>
    %114 = vector.shape_cast %113 : vector<1x4x256xbf16> to vector<4x256xbf16>
    %115 = vector.shape_cast %112 : vector<4x256xbf16> to vector<1x4x256xbf16>
    tpu.vector_store %arg10[%c0_61, %c28, %c0_62], %115 {strides = array<i32>} : memref<2x36x256xbf16, #tpu.memory_space<vmem>>, vector<1x4x256xbf16>,
    %116 = vector.extract_strided_slice %111 {offsets = [4, 0], sizes = [4, 256], strides = [1, 1]} : vector<8x256xbf16> to vector<4x256xbf16>
    %c1_63 = arith.constant 1 : index
    %c28_64 = arith.constant 28 : index
    %c0_65 = arith.constant 0 : index
    %117 = vector.load %arg10[%c1_63, %c28_64, %c0_65] : memref<2x36x256xbf16, #tpu.memory_space<vmem>>, vector<1x4x256xbf16>
    %118 = vector.shape_cast %117 : vector<1x4x256xbf16> to vector<4x256xbf16>
    %119 = vector.shape_cast %116 : vector<4x256xbf16> to vector<1x4x256xbf16>
    tpu.vector_store %arg10[%c1_63, %c28_64, %c0_65], %119 {strides = array<i32>} : memref<2x36x256xbf16, #tpu.memory_space<vmem>>, vector<1x4x256xbf16>,
    %c239_i32 = arith.constant 239 : i32
    %120 = tpu.dynamic_rotate %8 by %c239_i32 dim 1 : vector<8x256xf32>, i32 -> vector<8x256xf32>
    %c8_66 = arith.constant 8 : index
    %c0_67 = arith.constant 0 : index
    %c0_68 = arith.constant 0 : index
    %121 = vector.load %arg2[%c8_66, %c0_67, %c0_68] : memref<9x1x256xf32, #tpu.memory_space<vmem>>, vector<1x1x256xf32>
    %122 = vector.shape_cast %121 : vector<1x1x256xf32> to vector<1x256xf32>
    %123 = vector.broadcast %122 : vector<1x256xf32> to vector<8x256xf32>
    %124 = arith.mulf %120, %123 : vector<8x256xf32>
    %125 = arith.truncf %124 : vector<8x256xf32> to vector<8x256xbf16>
    %126 = vector.extract_strided_slice %125 {offsets = [0, 0], sizes = [4, 256], strides = [1, 1]} : vector<8x256xbf16> to vector<4x256xbf16>
    %c0_69 = arith.constant 0 : index
    %c32 = arith.constant 32 : index
    %c0_70 = arith.constant 0 : index
    %127 = vector.load %arg10[%c0_69, %c32, %c0_70] : memref<2x36x256xbf16, #tpu.memory_space<vmem>>, vector<1x4x256xbf16>
    %128 = vector.shape_cast %127 : vector<1x4x256xbf16> to vector<4x256xbf16>
    %129 = vector.shape_cast %126 : vector<4x256xbf16> to vector<1x4x256xbf16>
    tpu.vector_store %arg10[%c0_69, %c32, %c0_70], %129 {strides = array<i32>} : memref<2x36x256xbf16, #tpu.memory_space<vmem>>, vector<1x4x256xbf16>,
    %130 = vector.extract_strided_slice %125 {offsets = [4, 0], sizes = [4, 256], strides = [1, 1]} : vector<8x256xbf16> to vector<4x256xbf16>
    %c1_71 = arith.constant 1 : index
    %c32_72 = arith.constant 32 : index
    %c0_73 = arith.constant 0 : index
    %131 = vector.load %arg10[%c1_71, %c32_72, %c0_73] : memref<2x36x256xbf16, #tpu.memory_space<vmem>>, vector<1x4x256xbf16>
    %132 = vector.shape_cast %131 : vector<1x4x256xbf16> to vector<4x256xbf16>
    %133 = vector.shape_cast %130 : vector<4x256xbf16> to vector<1x4x256xbf16>
    tpu.vector_store %arg10[%c1_71, %c32_72, %c0_73], %133 {strides = array<i32>} : memref<2x36x256xbf16, #tpu.memory_space<vmem>>, vector<1x4x256xbf16>,
    %c0_i32 = arith.constant 0 : i32
    %c2_i32 = arith.constant 2 : i32
    %134 = arith.addi %c0_i32, %c2_i32 : i32
    %c1_i32_74 = arith.constant 1 : i32
    scf.for %arg12 = %c0_i32 to %134 step %c1_i32_74  : i32 {
      %c1_i32_91 = arith.constant 1 : i32
      %153 = arith.muli %arg12, %c1_i32_91 : i32
      %c0_i32_92 = arith.constant 0 : i32
      %154 = arith.addi %c0_i32_92, %153 : i32
      %155 = arith.index_cast %154 : i32 to index
      %c0_93 = arith.constant 0 : index
      %c0_94 = arith.constant 0 : index
      %156 = vector.load %arg4[%155, %c0_93, %c0_94] : memref<2x4x36xbf16, #tpu.memory_space<vmem>>, vector<1x4x36xbf16>
      %157 = vector.shape_cast %156 : vector<1x4x36xbf16> to vector<4x36xbf16>
      %158 = arith.index_cast %154 : i32 to index
      %c0_95 = arith.constant 0 : index
      %c0_96 = arith.constant 0 : index
      %159 = vector.load %arg10[%158, %c0_95, %c0_96] : memref<2x36x256xbf16, #tpu.memory_space<vmem>>, vector<1x36x256xbf16>
      %160 = vector.shape_cast %159 : vector<1x36x256xbf16> to vector<36x256xbf16>
      %cst_97 = arith.constant dense<0.000000e+00> : vector<4x256xf32>
      %161 = tpu.matmul %157, %160, %cst_97 {dimension_numbers = #tpu.dot_dimension_numbers<[1], [0], [0], [1], [0, 0, 1, 1], [], []>} : vector<4x36xbf16>, vector<36x256xbf16>, vector<4x256xf32> -> vector<4x256xf32>
      %162 = arith.index_cast %154 : i32 to index
      %c0_98 = arith.constant 0 : index
      %c0_99 = arith.constant 0 : index
      %163 = vector.load %arg7[%162, %c0_98, %c0_99] : memref<2x4x1xf32, #tpu.memory_space<vmem>>, vector<1x4x1xf32>
      %164 = vector.shape_cast %163 : vector<1x4x1xf32> to vector<4x1xf32>
      %165 = vector.broadcast %164 : vector<4x1xf32> to vector<4x256xf32>
      %166 = arith.addf %161, %165 : vector<4x256xf32>
      %cst_100 = arith.constant 0.000000e+00 : f32
      %167 = vector.broadcast %cst_100 : f32 to vector<4x256xf32>
      %168 = arith.maximumf %166, %167 : vector<4x256xf32>
      %169 = arith.truncf %168 : vector<4x256xf32> to vector<4x256xbf16>
      %170 = arith.index_cast %154 : i32 to index
      %c0_101 = arith.constant 0 : index
      %c0_102 = arith.constant 0 : index
      %171 = vector.load %arg11[%170, %c0_101, %c0_102] : memref<2x4x256xbf16, #tpu.memory_space<vmem>>, vector<1x4x256xbf16>
      %172 = vector.shape_cast %171 : vector<1x4x256xbf16> to vector<4x256xbf16>
      %173 = vector.shape_cast %169 : vector<4x256xbf16> to vector<1x4x256xbf16>
      tpu.vector_store %arg11[%170, %c0_101, %c0_102], %173 {strides = array<i32>} : memref<2x4x256xbf16, #tpu.memory_space<vmem>>, vector<1x4x256xbf16>,
    }
    %c2_i32_75 = arith.constant 2 : i32
    %c0_76 = arith.constant 0 : index
    %c0_77 = arith.constant 0 : index
    %c0_78 = arith.constant 0 : index
    %135 = vector.load %arg11[%c0_76, %c0_77, %c0_78] : memref<2x4x256xbf16, #tpu.memory_space<vmem>>, vector<1x4x256xbf16>
    %136 = vector.shape_cast %135 : vector<1x4x256xbf16> to vector<4x256xbf16>
    %c1_79 = arith.constant 1 : index
    %c0_80 = arith.constant 0 : index
    %c0_81 = arith.constant 0 : index
    %137 = vector.load %arg11[%c1_79, %c0_80, %c0_81] : memref<2x4x256xbf16, #tpu.memory_space<vmem>>, vector<1x4x256xbf16>
    %138 = vector.shape_cast %137 : vector<1x4x256xbf16> to vector<4x256xbf16>
    %139 = tpu.concatenate %136, %138 in 0 : vector<4x256xbf16>, vector<4x256xbf16> -> vector<8x256xbf16>
    %c0_82 = arith.constant 0 : index
    %c0_83 = arith.constant 0 : index
    %140 = vector.load %arg5[%c0_82, %c0_83] : memref<16x8xbf16, #tpu.memory_space<vmem>>, vector<16x8xbf16>
    %cst_84 = arith.constant dense<0.000000e+00> : vector<16x256xf32>
    %141 = tpu.matmul %140, %139, %cst_84 {dimension_numbers = #tpu.dot_dimension_numbers<[1], [0], [0], [1], [0, 0, 1, 1], [], []>} : vector<16x8xbf16>, vector<8x256xbf16>, vector<16x256xf32> -> vector<16x256xf32>
    %c0_85 = arith.constant 0 : index
    %c0_86 = arith.constant 0 : index
    %142 = vector.load %arg8[%c0_85, %c0_86] : memref<16x1xf32, #tpu.memory_space<vmem>>, vector<16x1xf32>
    %143 = vector.broadcast %142 : vector<16x1xf32> to vector<16x256xf32>
    %144 = arith.addf %141, %143 : vector<16x256xf32>
    %145 = arith.extf %1 : vector<16x256xbf16> to vector<16x256xf32>
    %146 = arith.addf %144, %145 : vector<16x256xf32>
    %cst_87 = arith.constant 0.000000e+00 : f32
    %147 = vector.broadcast %cst_87 : f32 to vector<16x256xf32>
    %148 = arith.maximumf %146, %147 : vector<16x256xf32>
    %149 = arith.truncf %148 : vector<16x256xf32> to vector<16x256xbf16>
    %c0_88 = arith.constant 0 : index
    %c0_89 = arith.constant 0 : index
    %c0_90 = arith.constant 0 : index
    %150 = vector.load %arg9[%c0_88, %c0_89, %c0_90] : memref<1x16x256xbf16, #tpu.memory_space<vmem>>, vector<1x16x256xbf16>
    %151 = vector.shape_cast %150 : vector<1x16x256xbf16> to vector<16x256xbf16>
    %152 = vector.shape_cast %149 : vector<16x256xbf16> to vector<1x16x256xbf16>
    tpu.vector_store %arg9[%c0_88, %c0_89, %c0_90], %152 {strides = array<i32>} : memref<1x16x256xbf16, #tpu.memory_space<vmem>>, vector<1x16x256xbf16>,
    return
  }
  func.func @transform_0(%arg0: i32) -> (i32, i32, i32) {
    %c0_i32 = arith.constant 0 : i32
    %c0_i32_0 = arith.constant 0 : i32
    %c0_i32_1 = arith.constant 0 : i32
    return %arg0, %c0_i32, %c0_i32_0 : i32, i32, i32
  }
  func.func @transform_1(%arg0: i32) -> (i32, i32, i32) {
    %c0_i32 = arith.constant 0 : i32
    %c0_i32_0 = arith.constant 0 : i32
    %c0_i32_1 = arith.constant 0 : i32
    %c0_i32_2 = arith.constant 0 : i32
    return %c0_i32, %c0_i32_0, %c0_i32_1 : i32, i32, i32
  }
  func.func @transform_2(%arg0: i32) -> (i32, i32) {
    %c0_i32 = arith.constant 0 : i32
    %c0_i32_0 = arith.constant 0 : i32
    %c0_i32_1 = arith.constant 0 : i32
    return %c0_i32, %c0_i32_0 : i32, i32
  }
  func.func @transform_3(%arg0: i32) -> (i32, i32, i32) {
    %c0_i32 = arith.constant 0 : i32
    %c0_i32_0 = arith.constant 0 : i32
    %c0_i32_1 = arith.constant 0 : i32
    %c0_i32_2 = arith.constant 0 : i32
    return %c0_i32, %c0_i32_0, %c0_i32_1 : i32, i32, i32
  }
  func.func @transform_4(%arg0: i32) -> (i32, i32) {
    %c0_i32 = arith.constant 0 : i32
    %c0_i32_0 = arith.constant 0 : i32
    %c0_i32_1 = arith.constant 0 : i32
    return %c0_i32, %c0_i32_0 : i32, i32
  }
  func.func @transform_5(%arg0: i32) -> (i32, i32) {
    %c0_i32 = arith.constant 0 : i32
    %c0_i32_0 = arith.constant 0 : i32
    %c0_i32_1 = arith.constant 0 : i32
    return %c0_i32, %c0_i32_0 : i32, i32
  }
  func.func @transform_6(%arg0: i32) -> (i32, i32, i32) {
    %c0_i32 = arith.constant 0 : i32
    %c0_i32_0 = arith.constant 0 : i32
    %c0_i32_1 = arith.constant 0 : i32
    %c0_i32_2 = arith.constant 0 : i32
    return %c0_i32, %c0_i32_0, %c0_i32_1 : i32, i32, i32
  }
  func.func @transform_7(%arg0: i32) -> (i32, i32) {
    %c0_i32 = arith.constant 0 : i32
    %c0_i32_0 = arith.constant 0 : i32
    %c0_i32_1 = arith.constant 0 : i32
    return %c0_i32, %c0_i32_0 : i32, i32
  }
  func.func @transform_8(%arg0: i32) -> (i32, i32, i32) {
    %c0_i32 = arith.constant 0 : i32
    %c0_i32_0 = arith.constant 0 : i32
    %c0_i32_1 = arith.constant 0 : i32
    return %arg0, %c0_i32, %c0_i32_0 : i32, i32, i32
  }
}

</mosaic_0001>

<llo_original>
// kernel: tpu_custom_call.1
$region0: #{tpu_custom_call.1}
  #allocation0 [shape = 'u32[]', space=smem, size = 0x4, offset = 0x4, fixed_abs, tag = 'smem constant byte address 0x4 - core index']
  #allocation1 [shape = 'u32[72,128]{1,0:T(1,128)}', space=vmem, size = 0x9000, scoped, tag = 'internal scratch']
  #allocation2 [shape = 'bf16[2,36,256]{2,1,0:T(8,128)(2,1)}', space=vmem, size = 0xa000, scoped, tag = 'scratch operand']
  #allocation3 [shape = 'bf16[2,4,256]{2,1,0:T(4,128)(2,1)}', space=vmem, size = 0x1000, scoped, tag = 'scratch operand']
  %s0 = inlined_call_operand.hbm [shape: bf16[2,16,256], index: 0, kind: input, shape index: {}]
  %s1 = inlined_call_operand.vmem [shape: f32[9,1,256], index: 1, kind: input, shape index: {}]
  %s2 = inlined_call_operand.vmem [shape: bf16[8,16], index: 2, kind: input, shape index: {}]
  %s3 = inlined_call_operand.vmem [shape: bf16[2,4,36], index: 3, kind: input, shape index: {}]
  %s4 = inlined_call_operand.vmem [shape: bf16[16,8], index: 4, kind: input, shape index: {}]
  %s5 = inlined_call_operand.vmem [shape: f32[8,1], index: 5, kind: input, shape index: {}]
  %s6 = inlined_call_operand.vmem [shape: f32[2,4,1], index: 6, kind: input, shape index: {}]
  %s7 = inlined_call_operand.vmem [shape: f32[16,1], index: 7, kind: input, shape index: {}]
  %s8 = inlined_call_operand.hbm [shape: bf16[2,16,256], index: 8, kind: output, shape index: {}]
  %s9 = sld [smem:[#allocation0]]
  $region76: #{tpu_custom_call.1} parent=0
    _
  %s11 = ssub.s32 1, %s9
  %s12 = scalar_select 0, %s11, %s9
  $region1: #{tpu_custom_call.1} parent=0
    #allocation4 [shape = 'u8[16384]{0}', space=vmem, size = 0x4000, scoped, tag = 'input window, operand 0']
    #allocation5 [shape = 's32[2]{0}', space=sflag, size = 0x8, scoped, tag = 'scoped memory for tpu_custom_call.1']
    #allocation6 [shape = 's32[2]{0}', space=sflag, size = 0x8, scoped, tag = 'scoped memory for tpu_custom_call.1']
    #allocation7 [shape = 'u8[16384]{0}', space=vmem, size = 0x4000, scoped, tag = 'output window, operand 0']
    %13 = vsyncpa [#allocation5], 0
    %s14 = scalar_lea.sflag [#allocation5], 1
    %15 = vsyncpa %s14, 0
    %16 = vsyncpa [#allocation6], 0
    %s17 = scalar_lea.sflag [#allocation6], 1
    %18 = vsyncpa %s17, 0
    loop: start=0, step=1, limit=4
    $region2: #{tpu_custom_call.1} parent=1 // loop_pre_header
      _
    $region3: #{tpu_custom_call.1} parent=1 // loop_header
      %s20 = sphi 0, %s24
      %p21 = scmp.ge.s32.totalorder %s20, 4
      %s30 = sphi 0, %s32
      %s33 = sphi 0, %s30
      %s34 = sphi 0, %s33
      %s50 = sphi 0, %s34
      %s54 = sphi 0, %s54
      %s56 = sphi 0, %s54
      %s57 = sphi 0, %s56
      %s71 = sphi 0, %s57
      %s75 = sphi 0, %s75
      %s77 = sphi 0, %s75
      %s78 = sphi 0, %s77
      %s92 = sphi 0, %s78
      %s96 = sphi 0, %s96
      %s98 = sphi 0, %s96
      %s99 = sphi 0, %s98
      %s113 = sphi 0, %s99
      %s117 = sphi 0, %s117
      %s119 = sphi 0, %s117
      %s120 = sphi 0, %s119
      %s134 = sphi 0, %s120
      %s138 = sphi 0, %s138
      %s140 = sphi 0, %s138
      %s141 = sphi 0, %s140
      %s155 = sphi 0, %s141
      %s159 = sphi 0, %s159
      %s161 = sphi 0, %s159
      %s162 = sphi 0, %s161
      %s176 = sphi 0, %s162
      %s180 = sphi 0, %s180
      %s182 = sphi 0, %s180
      %s183 = sphi 0, %s182
      %s197 = sphi 0, %s183
      %s203 = sphi 0, %s205
      %s206 = sphi 0, %s203
      %s207 = sphi 0, %s206
      %s223 = sphi 0, %s207
    $region4: #{tpu_custom_call.1} parent=1 // loop_header_branch
      %23 = sbr.rel (%p21) target = $region8
    $region5: #{tpu_custom_call.1} parent=1 // loop_body
      %s25 = ssub.s32 %s20, 1
      %s26 = ssub.s32 %s20, 2
      %s27 = sadd.s32 %s20, 1
      %s28 = ssub.s32 %s20, %s27
      %p29 = scmp.eq.s32.totalorder %s28, 0
      %s31 = sadd.s32 %s30, 1
      %s32 = scalar_select %p29, %s30, %s31
      %p35 = pneg %p29
      %p36 = scmp.eq.s32.totalorder %s20, 1
      %p37 = por %p35, %p36
      %p38 = scmp.ne.s32.totalorder %s30, %s33
      %p39 = scmp.eq.s32.totalorder %s20, 0
      %p40 = por %p38, %p39
      %p41 = scmp.ne.s32.totalorder %s30, %s33
      %p42 = scmp.eq.s32.totalorder %s25, 1
      %p43 = por %p41, %p42
      %p44 = scmp.ne.s32.totalorder %s33, %s34
      %p45 = scmp.eq.s32.totalorder %s25, 0
      %p46 = por %p44, %p45
      %p47 = scmp.ne.s32.totalorder %s33, %s34
      %p48 = scmp.eq.s32.totalorder %s26, 1
      %p49 = por %p47, %p48
      %p51 = scmp.ne.s32.totalorder %s34, %s50
      %p52 = scmp.eq.s32.totalorder %s26, 0
      %p53 = por %p51, %p52
      %s55 = sadd.s32 %s54, 1
      %p58 = scmp.eq.s32.totalorder %s20, 1
      %p59 = scmp.ne.s32.totalorder %s54, %s56
      %p60 = scmp.eq.s32.totalorder %s20, 0
      %p61 = por %p59, %p60
      %p62 = scmp.ne.s32.totalorder %s54, %s56
      %p63 = scmp.eq.s32.totalorder %s25, 1
      %p64 = por %p62, %p63
      %p65 = scmp.ne.s32.totalorder %s56, %s57
      %p66 = scmp.eq.s32.totalorder %s25, 0
      %p67 = por %p65, %p66
      %p68 = scmp.ne.s32.totalorder %s56, %s57
      %p69 = scmp.eq.s32.totalorder %s26, 1
      %p70 = por %p68, %p69
      %p72 = scmp.ne.s32.totalorder %s57, %s71
      %p73 = scmp.eq.s32.totalorder %s26, 0
      %p74 = por %p72, %p73
      %s76 = sadd.s32 %s75, 1
      %p79 = scmp.eq.s32.totalorder %s20, 1
      %p80 = scmp.ne.s32.totalorder %s75, %s77
      %p81 = scmp.eq.s32.totalorder %s20, 0
      %p82 = por %p80, %p81
      %p83 = scmp.ne.s32.totalorder %s75, %s77
      %p84 = scmp.eq.s32.totalorder %s25, 1
      %p85 = por %p83, %p84
      %p86 = scmp.ne.s32.totalorder %s77, %s78
      %p87 = scmp.eq.s32.totalorder %s25, 0
      %p88 = por %p86, %p87
      %p89 = scmp.ne.s32.totalorder %s77, %s78
      %p90 = scmp.eq.s32.totalorder %s26, 1
      %p91 = por %p89, %p90
      %p93 = scmp.ne.s32.totalorder %s78, %s92
      %p94 = scmp.eq.s32.totalorder %s26, 0
      %p95 = por %p93, %p94
      %s97 = sadd.s32 %s96, 1
      %p100 = scmp.eq.s32.totalorder %s20, 1
      %p101 = scmp.ne.s32.totalorder %s96, %s98
      %p102 = scmp.eq.s32.totalorder %s20, 0
      %p103 = por %p101, %p102
      %p104 = scmp.ne.s32.totalorder %s96, %s98
      %p105 = scmp.eq.s32.totalorder %s25, 1
      %p106 = por %p104, %p105
      %p107 = scmp.ne.s32.totalorder %s98, %s99
      %p108 = scmp.eq.s32.totalorder %s25, 0
      %p109 = por %p107, %p108
      %p110 = scmp.ne.s32.totalorder %s98, %s99
      %p111 = scmp.eq.s32.totalorder %s26, 1
      %p112 = por %p110, %p111
      %p114 = scmp.ne.s32.totalorder %s99, %s113
      %p115 = scmp.eq.s32.totalorder %s26, 0
      %p116 = por %p114, %p115
      %s118 = sadd.s32 %s117, 1
      %p121 = scmp.eq.s32.totalorder %s20, 1
      %p122 = scmp.ne.s32.totalorder %s117, %s119
      %p123 = scmp.eq.s32.totalorder %s20, 0
      %p124 = por %p122, %p123
      %p125 = scmp.ne.s32.totalorder %s117, %s119
      %p126 = scmp.eq.s32.totalorder %s25, 1
      %p127 = por %p125, %p126
      %p128 = scmp.ne.s32.totalorder %s119, %s120
      %p129 = scmp.eq.s32.totalorder %s25, 0
      %p130 = por %p128, %p129
      %p131 = scmp.ne.s32.totalorder %s119, %s120
      %p132 = scmp.eq.s32.totalorder %s26, 1
      %p133 = por %p131, %p132
      %p135 = scmp.ne.s32.totalorder %s120, %s134
      %p136 = scmp.eq.s32.totalorder %s26, 0
      %p137 = por %p135, %p136
      %s139 = sadd.s32 %s138, 1
      %p142 = scmp.eq.s32.totalorder %s20, 1
      %p143 = scmp.ne.s32.totalorder %s138, %s140
      %p144 = scmp.eq.s32.totalorder %s20, 0
      %p145 = por %p143, %p144
      %p146 = scmp.ne.s32.totalorder %s138, %s140
      %p147 = scmp.eq.s32.totalorder %s25, 1
      %p148 = por %p146, %p147
      %p149 = scmp.ne.s32.totalorder %s140, %s141
      %p150 = scmp.eq.s32.totalorder %s25, 0
      %p151 = por %p149, %p150
      %p152 = scmp.ne.s32.totalorder %s140, %s141
      %p153 = scmp.eq.s32.totalorder %s26, 1
      %p154 = por %p152, %p153
      %p156 = scmp.ne.s32.totalorder %s141, %s155
      %p157 = scmp.eq.s32.totalorder %s26, 0
      %p158 = por %p156, %p157
      %s160 = sadd.s32 %s159, 1
      %p163 = scmp.eq.s32.totalorder %s20, 1
      %p164 = scmp.ne.s32.totalorder %s159, %s161
      %p165 = scmp.eq.s32.totalorder %s20, 0
      %p166 = por %p164, %p165
      %p167 = scmp.ne.s32.totalorder %s159, %s161
      %p168 = scmp.eq.s32.totalorder %s25, 1
      %p169 = por %p167, %p168
      %p170 = scmp.ne.s32.totalorder %s161, %s162
      %p171 = scmp.eq.s32.totalorder %s25, 0
      %p172 = por %p170, %p171
      %p173 = scmp.ne.s32.totalorder %s161, %s162
      %p174 = scmp.eq.s32.totalorder %s26, 1
      %p175 = por %p173, %p174
      %p177 = scmp.ne.s32.totalorder %s162, %s176
      %p178 = scmp.eq.s32.totalorder %s26, 0
      %p179 = por %p177, %p178
      %s181 = sadd.s32 %s180, 1
      %p184 = scmp.eq.s32.totalorder %s20, 1
      %p185 = scmp.ne.s32.totalorder %s180, %s182
      %p186 = scmp.eq.s32.totalorder %s20, 0
      %p187 = por %p185, %p186
      %p188 = scmp.ne.s32.totalorder %s180, %s182
      %p189 = scmp.eq.s32.totalorder %s25, 1
      %p190 = por %p188, %p189
      %p191 = scmp.ne.s32.totalorder %s182, %s183
      %p192 = scmp.eq.s32.totalorder %s25, 0
      %p193 = por %p191, %p192
      %p194 = scmp.ne.s32.totalorder %s182, %s183
      %p195 = scmp.eq.s32.totalorder %s26, 1
      %p196 = por %p194, %p195
      %p198 = scmp.ne.s32.totalorder %s183, %s197
      %p199 = scmp.eq.s32.totalorder %s26, 0
      %p200 = por %p198, %p199
      %s201 = ssub.s32 %s20, %s27
      %p202 = scmp.eq.s32.totalorder %s201, 0
      %s204 = sadd.s32 %s203, 1
      %s205 = scalar_select %p202, %s203, %s204
      %p208 = pneg %p202
      %p209 = scmp.eq.s32.totalorder %s20, 1
      %p210 = por %p208, %p209
      %p211 = scmp.ne.s32.totalorder %s203, %s206
      %p212 = scmp.eq.s32.totalorder %s20, 0
      %p213 = por %p211, %p212
      %p214 = scmp.ne.s32.totalorder %s203, %s206
      %p215 = scmp.eq.s32.totalorder %s25, 1
      %p216 = por %p214, %p215
      %p217 = scmp.ne.s32.totalorder %s206, %s207
      %p218 = scmp.eq.s32.totalorder %s25, 0
      %p219 = por %p217, %p218
      %p220 = scmp.ne.s32.totalorder %s206, %s207
      %p221 = scmp.eq.s32.totalorder %s26, 1
      %p222 = por %p220, %p221
      %p224 = scmp.ne.s32.totalorder %s207, %s223
      %p225 = scmp.eq.s32.totalorder %s26, 0
      %p226 = por %p224, %p225
      %p227 = scmp.le.s32.totalorder 1, %s20
      %p228 = scmp.lt.s32.totalorder %s20, 3
      %p229 = pnand %p227, %p228
      %p230 = pneg %p229
      // Predicated region
      $region9: #{tpu_custom_call.1} parent=5 // pred_check
        _
      $region10: #{tpu_custom_call.1} parent=5 // pred_check_branch
        %232 = sbr.rel (%p229) target = $region12
      $region11: #{tpu_custom_call.1} parent=5 // pred_region
        %s233 = ssub.s32 %s20, 1
        // Predicated region
        $region13: #{tpu_custom_call.1} parent=11 // pred_check
          %p234 = pneg %p67
        $region14: #{tpu_custom_call.1} parent=11 // pred_check_branch
          %236 = sbr.rel (%p234) target = $region16
        $region15: #{tpu_custom_call.1} parent=11 // pred_region
          _
        $region16: #{tpu_custom_call.1} parent=11 // pred_fallthru
          _
        // Predicated region
        $region17: #{tpu_custom_call.1} parent=11 // pred_check
          %p237 = pneg %p88
        $region18: #{tpu_custom_call.1} parent=11 // pred_check_branch
          %239 = sbr.rel (%p237) target = $region20
        $region19: #{tpu_custom_call.1} parent=11 // pred_region
          _
        $region20: #{tpu_custom_call.1} parent=11 // pred_fallthru
          _
        // Predicated region
        $region21: #{tpu_custom_call.1} parent=11 // pred_check
          %p240 = pneg %p109
        $region22: #{tpu_custom_call.1} parent=11 // pred_check_branch
          %242 = sbr.rel (%p240) target = $region24
        $region23: #{tpu_custom_call.1} parent=11 // pred_region
          _
        $region24: #{tpu_custom_call.1} parent=11 // pred_fallthru
          _
        // Predicated region
        $region25: #{tpu_custom_call.1} parent=11 // pred_check
          %p243 = pneg %p130
        $region26: #{tpu_custom_call.1} parent=11 // pred_check_branch
          %245 = sbr.rel (%p243) target = $region28
        $region27: #{tpu_custom_call.1} parent=11 // pred_region
          _
        $region28: #{tpu_custom_call.1} parent=11 // pred_fallthru
          _
        // Predicated region
        $region29: #{tpu_custom_call.1} parent=11 // pred_check
          %p246 = pneg %p151
        $region30: #{tpu_custom_call.1} parent=11 // pred_check_branch
          %248 = sbr.rel (%p246) target = $region32
        $region31: #{tpu_custom_call.1} parent=11 // pred_region
          _
        $region32: #{tpu_custom_call.1} parent=11 // pred_fallthru
          _
        // Predicated region
        $region33: #{tpu_custom_call.1} parent=11 // pred_check
          %p249 = pneg %p172
        $region34: #{tpu_custom_call.1} parent=11 // pred_check_branch
          %251 = sbr.rel (%p249) target = $region36
        $region35: #{tpu_custom_call.1} parent=11 // pred_region
          _
        $region36: #{tpu_custom_call.1} parent=11 // pred_fallthru
          _
        // Predicated region
        $region37: #{tpu_custom_call.1} parent=11 // pred_check
          %p252 = pneg %p193
        $region38: #{tpu_custom_call.1} parent=11 // pred_check_branch
          %254 = sbr.rel (%p252) target = $region40
        $region39: #{tpu_custom_call.1} parent=11 // pred_region
          _
        $region40: #{tpu_custom_call.1} parent=11 // pred_fallthru
          _
      $region12: #{tpu_custom_call.1} parent=5 // pred_fallthru
        _
      %p255 = scmp.lt.s32.totalorder %s20, 2
      // Predicated region
      $region41: #{tpu_custom_call.1} parent=5 // pred_check
        %p256 = pneg %p255
      $region42: #{tpu_custom_call.1} parent=5 // pred_check_branch
        %258 = sbr.rel (%p256) target = $region44
      $region43: #{tpu_custom_call.1} parent=5 // pred_region
        // Predicated region
        $region45: #{tpu_custom_call.1} parent=43 // pred_check
          %p259 = pneg %p40
        $region46: #{tpu_custom_call.1} parent=43 // pred_check_branch
          %261 = sbr.rel (%p259) target = $region48
        $region47: #{tpu_custom_call.1} parent=43 // pred_region
          %s262 = sand.u32 %s30, 1
          %s263 = scalar_lea.sflag [#allocation5], %s262
          %s264 = sand.u32 %s30, 1
          %s265 = smul.addr %s264, 16
          %s266 = scalar_lea.vmem [#allocation4], %s265
          %268 = vsyncadd %s263, 0
          %s269 = smul.addr %s20, 4
          %s270 = smul.addr %s269, 4
          %s271 = scalar_lea.hbm %s0, %s270
          %s272 = sshll.u32 %s271, 4
          %s273 = int_to_ptr.hbm [resolvable:$true] %s272
          %s274 = sshll.u32 %s266, 4
          %s275 = int_to_ptr.vmem [resolvable:$true] %s274
          %280 = dma.hbm_to_vmem [thread:$0]  %s273, 256, %s275, %s263, 128, 128, 8
        $region48: #{tpu_custom_call.1} parent=43 // pred_fallthru
          _
      $region44: #{tpu_custom_call.1} parent=5 // pred_fallthru
        _
      %p281 = scmp.le.s32.totalorder 1, %s20
      %p282 = scmp.lt.s32.totalorder %s20, 3
      %p283 = pnand %p281, %p282
      %p284 = pneg %p283
      // Predicated region
      $region49: #{tpu_custom_call.1} parent=5 // pred_check
        _
      $region50: #{tpu_custom_call.1} parent=5 // pred_check_branch
        %286 = sbr.rel (%p283) target = $region52
      $region51: #{tpu_custom_call.1} parent=5 // pred_region
        %s287 = ssub.s32 %s20, 1
        %s288 = sand.u32 %s33, 1
        %s289 = scalar_lea.sflag [#allocation5], %s288
        %s290 = sand.u32 %s33, 1
        %s291 = smul.addr %s290, 16
        %s292 = scalar_lea.vmem [#allocation4], %s291
        // Predicated region
        $region53: #{tpu_custom_call.1} parent=51 // pred_check
          %p293 = pneg %p46
        $region54: #{tpu_custom_call.1} parent=51 // pred_check_branch
          %295 = sbr.rel (%p293) target = $region56
        $region55: #{tpu_custom_call.1} parent=51 // pred_region
          %297 = dma.done %s289, 256
        $region56: #{tpu_custom_call.1} parent=51 // pred_fallthru
          _
        %s298 = sand.u32 %s33, 1
        %s299 = scalar_lea.sflag [#allocation5], %s298
        %s300 = sand.u32 %s33, 1
        %s301 = smul.addr %s300, 16
        %s302 = scalar_lea.vmem [#allocation4], %s301
        %p303 = pneg %p46
        %p304 = pneg %p43
        %p305 = pneg %p67
        %p306 = pneg %p64
        %p307 = pneg %p88
        %p308 = pneg %p85
        %p309 = pneg %p109
        %p310 = pneg %p106
        %p311 = pneg %p130
        %p312 = pneg %p127
        %p313 = pneg %p151
        %p314 = pneg %p148
        %p315 = pneg %p172
        %p316 = pneg %p169
        %p317 = pneg %p193
        %p318 = pneg %p190
        %p319 = pneg %p219
        %p320 = pneg %p216
        %s321 = sand.u32 %s206, 1
        %s322 = scalar_lea.sflag [#allocation6], %s321
        %s323 = sand.u32 %s206, 1
        %s324 = smul.addr %s323, 16
        %s325 = scalar_lea.vmem [#allocation7], %s324
        %v327 = vld [vmem:[%s292] sm:$0xff]
        %v328 = vld [vmem:[%s292 + $0x8] sm:$0xff]
        %v329 = vld [vmem:[%s2] sm:$0xf]
        %v330 = vld [vmem:[%s5] sm:$0xff]
        %332 = vset.pattern.permute.xlu0 0
        %333 = vperm.xlu0 %332, %v330
        %v334 = vpop.permute.xlu0 %333
        %v338 = vunpack.c.l.b16 %v327
        %v339 = vunpack.c.h.b16 %v327
        %v340 = vunpack.c.l.b16 %v328
        %v341 = vunpack.c.h.b16 %v328
        %v342 = vpack.c.b16 %v340, %v338
        %v343 = vpack.c.b16 %v341, %v339
        %vm346 = vcmask 130048
        %v348 = vsel %vm346, %v329, 0
        %350 = vmatpush.bf16.msra.mxu0 0
        %351 = vmatpush.bf16.msra.mxu0 0
        %352 = vmatpush.bf16.msra.mxu0 0
        %353 = vmatpush.bf16.msra.mxu0 0
        %354 = vmatpush.bf16.msra.mxu0 0
        %355 = vmatpush.bf16.msra.mxu0 0
        %356 = vmatpush.bf16.msra.mxu0 0
        %357 = vmatpush.bf16.msra.mxu0 %v342
        %358 = vmatmul.bf16.gmra.mxu0 %v348
        %v359 = vpop.f32.mrf.mxu0
        %v360 = vadd.f32 %v334, %v359
        %v361 = vpop.f32.mrf.mxu0
        %362 = vdwg.mxu0
        %363 = vmatpush.bf16.msra.mxu0 0
        %364 = vmatpush.bf16.msra.mxu0 0
        %365 = vmatpush.bf16.msra.mxu0 0
        %366 = vmatpush.bf16.msra.mxu0 0
        %367 = vmatpush.bf16.msra.mxu0 0
        %368 = vmatpush.bf16.msra.mxu0 0
        %369 = vmatpush.bf16.msra.mxu0 0
        %370 = vmatpush.bf16.msra.mxu0 %v343
        %371 = vmatmul.bf16.gmra.mxu0 %v348
        %v372 = vpop.f32.mrf.mxu0
        %v373 = vadd.f32 %v334, %v372
        %v374 = vpop.f32.mrf.mxu0
        %375 = vdwg.mxu0
        %v376 = vmax.f32 %v360, 0.0
        %v377 = vmax.f32 %v373, 0.0
        %378 = vrot.lane.b32.xlu0 %v376, 17
        %v379 = vpop.permute.xlu0 %378
        %380 = vrot.lane.b32.xlu0 %v377, 17
        %v381 = vpop.permute.xlu0 %380
        %v382 = vlaneseq
        %v383 = vand.u32 %v382, 127
        %vm384 = vcmp.lt.s32.totalorder %v383, 17
        %v385 = vsel %vm384, %v379, %v381
        %v386 = vsel %vm384, %v381, %v379
        %v387 = vld [vmem:[%s1] sm:$0x3]
        %v389 = vperm.slane %v387, 0
        %v390 = vperm.slane %v387, 1
        %v393 = vmul.f32 %v386, %v389
        %v394 = vmul.f32 %v385, %v390
        %v395 = vpack.c.bf16 %v394, %v393
        %396 = vst [vmem:[#allocation2] sm:$0x33] %v395
        %v398 = vrot.slane %v395, 6
        %v399 = vrot.slane %v398, 4
        %s401 = scalar_lea.vmem [#allocation2], 40
        %402 = vst [vmem:[%s401] sm:$0x33] %v399
        %403 = vrot.lane.b32.xlu0 %v376, 16
        %v404 = vpop.permute.xlu0 %403
        %405 = vrot.lane.b32.xlu0 %v377, 16
        %v406 = vpop.permute.xlu0 %405
        %vm407 = vcmp.lt.s32.totalorder %v383, 16
        %v408 = vsel %vm407, %v404, %v406
        %v409 = vsel %vm407, %v406, %v404
        %s410 = scalar_lea.vmem %s1, 2
        %v411 = vld [vmem:[%s410] sm:$0x3]
        %v413 = vperm.slane %v411, 0
        %v414 = vperm.slane %v411, 1
        %v417 = vmul.f32 %v409, %v413
        %v418 = vmul.f32 %v408, %v414
        %v419 = vpack.c.bf16 %v418, %v417
        %v421 = vrot.slane %v419, 6
        %423 = vst [vmem:[#allocation2] sm:$0xcc] %v421
        %424 = vst [vmem:[%s401] sm:$0xcc] %v419
        %425 = vrot.lane.b32.xlu0 %v376, 15
        %v426 = vpop.permute.xlu0 %425
        %427 = vrot.lane.b32.xlu0 %v377, 15
        %v428 = vpop.permute.xlu0 %427
        %vm429 = vcmp.lt.s32.totalorder %v383, 15
        %v430 = vsel %vm429, %v426, %v428
        %v431 = vsel %vm429, %v428, %v426
        %s432 = scalar_lea.vmem %s1, 4
        %v433 = vld [vmem:[%s432] sm:$0x3]
        %v435 = vperm.slane %v433, 0
        %v436 = vperm.slane %v433, 1
        %v439 = vmul.f32 %v431, %v435
        %v440 = vmul.f32 %v430, %v436
        %v441 = vpack.c.bf16 %v440, %v439
        %442 = vst [vmem:[#allocation2 + $0x8] sm:$0x33] %v441
        %v444 = vrot.slane %v441, 6
        %v445 = vrot.slane %v444, 4
        %447 = vst [vmem:[%s401 + $0x8] sm:$0x33] %v445
        %448 = vrot.lane.b32.xlu0 %v376, 1
        %v449 = vpop.permute.xlu0 %448
        %450 = vrot.lane.b32.xlu0 %v377, 1
        %v451 = vpop.permute.xlu0 %450
        %vm452 = vcmp.lt.s32.totalorder %v383, 1
        %v453 = vsel %vm452, %v449, %v451
        %v454 = vsel %vm452, %v451, %v449
        %s455 = scalar_lea.vmem %s1, 6
        %v456 = vld [vmem:[%s455] sm:$0x3]
        %v458 = vperm.slane %v456, 0
        %v459 = vperm.slane %v456, 1
        %v462 = vmul.f32 %v454, %v458
        %v463 = vmul.f32 %v453, %v459
        %v464 = vpack.c.bf16 %v463, %v462
        %v466 = vrot.slane %v464, 6
        %468 = vst [vmem:[#allocation2 + $0x8] sm:$0xcc] %v466
        %469 = vst [vmem:[%s401 + $0x8] sm:$0xcc] %v464
        %s470 = scalar_lea.vmem %s1, 8
        %v471 = vld [vmem:[%s470] sm:$0x3]
        %v473 = vperm.slane %v471, 0
        %v474 = vperm.slane %v471, 1
        %v477 = vmul.f32 %v376, %v473
        %v478 = vmul.f32 %v377, %v474
        %v479 = vpack.c.bf16 %v478, %v477
        %480 = vst [vmem:[#allocation2 + $0x10] sm:$0x33] %v479
        %v482 = vrot.slane %v479, 6
        %v483 = vrot.slane %v482, 4
        %485 = vst [vmem:[%s401 + $0x10] sm:$0x33] %v483
        %486 = vrot.lane.b32.xlu0 %v376, 127
        %v487 = vpop.permute.xlu0 %486
        %488 = vrot.lane.b32.xlu0 %v377, 127
        %v489 = vpop.permute.xlu0 %488
        %vm490 = vcmp.lt.s32.totalorder %v383, 127
        %v491 = vsel %vm490, %v487, %v489
        %v492 = vsel %vm490, %v489, %v487
        %s493 = scalar_lea.vmem %s1, 10
        %v494 = vld [vmem:[%s493] sm:$0x3]
        %v496 = vperm.slane %v494, 0
        %v497 = vperm.slane %v494, 1
        %v500 = vmul.f32 %v491, %v496
        %v501 = vmul.f32 %v492, %v497
        %v502 = vpack.c.bf16 %v501, %v500
        %v504 = vrot.slane %v502, 6
        %506 = vst [vmem:[#allocation2 + $0x10] sm:$0xcc] %v504
        %507 = vst [vmem:[%s401 + $0x10] sm:$0xcc] %v502
        %508 = vrot.lane.b32.xlu0 %v376, 113
        %v509 = vpop.permute.xlu0 %508
        %510 = vrot.lane.b32.xlu0 %v377, 113
        %v511 = vpop.permute.xlu0 %510
        %vm512 = vcmp.lt.s32.totalorder %v383, 113
        %v513 = vsel %vm512, %v509, %v511
        %v514 = vsel %vm512, %v511, %v509
        %s515 = scalar_lea.vmem %s1, 12
        %v516 = vld [vmem:[%s515] sm:$0x3]
        %v518 = vperm.slane %v516, 0
        %v519 = vperm.slane %v516, 1
        %v522 = vmul.f32 %v513, %v518
        %v523 = vmul.f32 %v514, %v519
        %v524 = vpack.c.bf16 %v523, %v522
        %525 = vst [vmem:[#allocation2 + $0x18] sm:$0x33] %v524
        %v527 = vrot.slane %v524, 6
        %v528 = vrot.slane %v527, 4
        %530 = vst [vmem:[%s401 + $0x18] sm:$0x33] %v528
        %531 = vrot.lane.b32.xlu0 %v376, 112
        %v532 = vpop.permute.xlu0 %531
        %533 = vrot.lane.b32.xlu0 %v377, 112
        %v534 = vpop.permute.xlu0 %533
        %vm535 = vcmp.lt.s32.totalorder %v383, 112
        %v536 = vsel %vm535, %v532, %v534
        %v537 = vsel %vm535, %v534, %v532
        %s538 = scalar_lea.vmem %s1, 14
        %v539 = vld [vmem:[%s538] sm:$0x3]
        %v541 = vperm.slane %v539, 0
        %v542 = vperm.slane %v539, 1
        %v545 = vmul.f32 %v536, %v541
        %v546 = vmul.f32 %v537, %v542
        %v547 = vpack.c.bf16 %v546, %v545
        %v549 = vrot.slane %v547, 6
        %551 = vst [vmem:[#allocation2 + $0x18] sm:$0xcc] %v549
        %552 = vst [vmem:[%s401 + $0x18] sm:$0xcc] %v547
        %553 = vrot.lane.b32.xlu0 %v376, 111
        %v554 = vpop.permute.xlu0 %553
        %555 = vrot.lane.b32.xlu0 %v377, 111
        %v556 = vpop.permute.xlu0 %555
        %vm557 = vcmp.lt.s32.totalorder %v383, 111
        %v558 = vsel %vm557, %v554, %v556
        %v559 = vsel %vm557, %v556, %v554
        %s560 = scalar_lea.vmem %s1, 16
        %v561 = vld [vmem:[%s560] sm:$0x3]
        %v563 = vperm.slane %v561, 0
        %v564 = vperm.slane %v561, 1
        %v567 = vmul.f32 %v558, %v563
        %v568 = vmul.f32 %v559, %v564
        %v569 = vpack.c.bf16 %v568, %v567
        %570 = vst [vmem:[#allocation2 + $0x20] sm:$0x33] %v569
        %v572 = vrot.slane %v569, 6
        %v573 = vrot.slane %v572, 4
        %575 = vst [vmem:[%s401 + $0x20] sm:$0x33] %v573
        loop: start=0, step=1, limit=2
        $region57: #{tpu_custom_call.1} parent=51 // loop_pre_header
          _
        $region58: #{tpu_custom_call.1} parent=51 // loop_header
          %s577 = sphi 0, %s581
          %p578 = scmp.ge.s32.totalorder %s577, 2
        $region59: #{tpu_custom_call.1} parent=51 // loop_header_branch
          %580 = sbr.rel (%p578) target = $region63
        $region60: #{tpu_custom_call.1} parent=51 // loop_body
          %s582 = smul.addr %s577, 2
          %s583 = scalar_lea.vmem %s3, %s582
          %v584 = vld [vmem:[%s583] sm:$0x3]
          %s585 = smul.u32 %s577, 10
          %s586 = smul.addr %s585, 4
          %s587 = scalar_lea.vmem [#allocation2], %s586
          %v588 = vld [vmem:[%s587] sm:$0xff]
          %v589 = vld [vmem:[%s587 + $0x8] sm:$0xff]
          %v590 = vld [vmem:[%s587 + $0x10] sm:$0xff]
          %v591 = vld [vmem:[%s587 + $0x18] sm:$0xff]
          %v592 = vld [vmem:[%s587 + $0x20] sm:$0x33]
          %s593 = smul.u32 %s577, 4
          %s594 = scalar_lea.vmem %s6, %s593
          %v595 = vld [vmem:[%s594] sm:$0xf]
          %597 = vset.pattern.permute.xlu0 0
          %598 = vperm.xlu0 %597, %v595
          %v599 = vpop.permute.xlu0 %598
          %v606 = vunpack.c.l.b16 %v588
          %v607 = vunpack.c.h.b16 %v588
          %v608 = vunpack.c.l.b16 %v589
          %v609 = vunpack.c.h.b16 %v589
          %v610 = vunpack.c.l.b16 %v590
          %v611 = vunpack.c.h.b16 %v590
          %v612 = vunpack.c.l.b16 %v591
          %v613 = vunpack.c.h.b16 %v591
          %v614 = vunpack.c.l.b16 %v592
          %v615 = vunpack.c.h.b16 %v592
          %v616 = vpack.c.b16 %v608, %v606
          %v617 = vpack.c.b16 %v609, %v607
          %v618 = vpack.c.b16 %v612, %v610
          %v619 = vpack.c.b16 %v613, %v611
          %v620 = vpack.c.b16 %v614, %v614
          %v621 = vpack.c.b16 %v615, %v615
          %vm626 = vcmask 293888
          %v628 = vsel %vm626, %v584, 0
          %vm630 = vcmask 1041408
          %v632 = vsel %vm630, %v620, 0
          %v635 = vsel %vm630, %v621, 0
          %637 = vmatpush.bf16.msra.mxu0 0
          %638 = vmatpush.bf16.msra.mxu0 0
          %639 = vmatpush.bf16.msra.mxu0 0
          %640 = vmatpush.bf16.msra.mxu0 0
          %641 = vmatpush.bf16.msra.mxu0 0
          %642 = vmatpush.bf16.msra.mxu0 %v632
          %643 = vmatpush.bf16.msra.mxu0 %v618
          %644 = vmatpush.bf16.msra.mxu0 %v616
          %645 = vmatmul.bf16.gmra.mxu0 %v628
          %v646 = vpop.f32.mrf.mxu0
          %v647 = vadd.f32 %v599, %v646
          %v648 = vpop.f32.mrf.mxu0
          %649 = vdwg.mxu0
          %650 = vmatpush.bf16.msra.mxu0 0
          %651 = vmatpush.bf16.msra.mxu0 0
          %652 = vmatpush.bf16.msra.mxu0 0
          %653 = vmatpush.bf16.msra.mxu0 0
          %654 = vmatpush.bf16.msra.mxu0 0
          %655 = vmatpush.bf16.msra.mxu0 %v635
          %656 = vmatpush.bf16.msra.mxu0 %v619
          %657 = vmatpush.bf16.msra.mxu0 %v617
          %658 = vmatmul.bf16.gmra.mxu0 %v628
          %v659 = vpop.f32.mrf.mxu0
          %v660 = vadd.f32 %v599, %v659
          %v661 = vpop.f32.mrf.mxu0
          %662 = vdwg.mxu0
          %v663 = vmax.f32 %v647, 0.0
          %v664 = vmax.f32 %v660, 0.0
          %v665 = vpack.c.bf16 %v664, %v663
          %v667 = vrot.slane %v665, 2
          %v670 = vsel %vm630, %v665, %v667
          %s672 = smul.u32 %s577, 2
          %s673 = smul.addr %s672, 2
          %s674 = scalar_lea.vmem [#allocation3], %s673
          %675 = vst [vmem:[%s674] sm:$0xf] %v670
        $region61: #{tpu_custom_call.1} parent=51 // loop_footer
          %s581 = sadd.s32 1, %s577
        $region62: #{tpu_custom_call.1} parent=51 // loop_footer_branch
          %576 = sbr.rel target = $region58
        $region63: #{tpu_custom_call.1} parent=51 // loop_exit
          _
        %v676 = vld [vmem:[#allocation3] sm:$0xf]
        %s677 = scalar_lea.vmem [#allocation3], 4
        %v678 = vld [vmem:[%s677] sm:$0xf]
        %680 = vst [vmem:[#allocation1] ss:$4 sm:$0xff] %v676
        %v681 = vld.sshfl [vmem:[#allocation1] sm:$0xff pattern:$0x73625140]
        %v682 = vld.sshfl [vmem:[#allocation1 + $0x8] sm:$0xff pattern:$0x73625140]
        %s684 = scalar_lea.vmem [#allocation1], 1
        %685 = vst [vmem:[%s684] ss:$4 sm:$0xff] %v678
        %v686 = vld.sshfl [vmem:[#allocation1] sm:$0xff pattern:$0x73625140]
        %v687 = vld.sshfl [vmem:[#allocation1 + $0x8] sm:$0xff pattern:$0x73625140]
        %vm688 = vcmask 1041408
        %v689 = vsel %vm688, %v681, %v686
        %v690 = vsel %vm688, %v682, %v687
        %v691 = vld [vmem:[%s4] sm:$0xf]
        %v692 = vld [vmem:[%s4 + $0x4] sm:$0xf]
        %v693 = vld [vmem:[%s7] sm:$0xff]
        %v694 = vld [vmem:[%s7 + $0x8] sm:$0xff]
        %696 = vset.pattern.permute.xlu0 0
        %697 = vperm.xlu0 %696, %v693
        %v698 = vpop.permute.xlu0 %697
        %701 = vset.pattern.permute.xlu0 0
        %702 = vperm.xlu0 %701, %v694
        %v703 = vpop.permute.xlu0 %702
        %v707 = vunpack.c.l.b16 %v691
        %v708 = vunpack.c.l.b16 %v692
        %v709 = vpack.c.b16 %v708, %v707
        %vm710 = vcmask 64512
        %v712 = vsel %vm710, %v709, 0
        %vm714 = vcmask 1043456
        %v715 = vsel %vm714, %v689, 0
        %v717 = vsel %vm714, %v690, 0
        %719 = vmatpush.bf16.msra.mxu0 0
        %720 = vmatpush.bf16.msra.mxu0 0
        %721 = vmatpush.bf16.msra.mxu0 0
        %722 = vmatpush.bf16.msra.mxu0 0
        %723 = vmatpush.bf16.msra.mxu0 0
        %724 = vmatpush.bf16.msra.mxu0 0
        %725 = vmatpush.bf16.msra.mxu0 0
        %726 = vmatpush.bf16.msra.mxu0 %v715
        %727 = vmatmul.bf16.gmra.mxu0 %v712
        %v728 = vpop.f32.mrf.mxu0
        %v729 = vadd.f32 %v698, %v728
        %v730 = vpop.f32.mrf.mxu0
        %v731 = vadd.f32 %v703, %v730
        %732 = vdwg.mxu0
        %733 = vmatpush.bf16.msra.mxu0 0
        %734 = vmatpush.bf16.msra.mxu0 0
        %735 = vmatpush.bf16.msra.mxu0 0
        %736 = vmatpush.bf16.msra.mxu0 0
        %737 = vmatpush.bf16.msra.mxu0 0
        %738 = vmatpush.bf16.msra.mxu0 0
        %739 = vmatpush.bf16.msra.mxu0 0
        %740 = vmatpush.bf16.msra.mxu0 %v717
        %741 = vmatmul.bf16.gmra.mxu0 %v712
        %v742 = vpop.f32.mrf.mxu0
        %v743 = vadd.f32 %v698, %v742
        %v744 = vpop.f32.mrf.mxu0
        %v745 = vadd.f32 %v703, %v744
        %746 = vdwg.mxu0
        %v747 = vunpack.c.l.bf16 %v327
        %v748 = vunpack.c.h.bf16 %v327
        %v749 = vunpack.c.l.bf16 %v328
        %v750 = vunpack.c.h.bf16 %v328
        %v751 = vadd.f32 %v729, %v747
        %v752 = vadd.f32 %v743, %v748
        %v753 = vadd.f32 %v731, %v749
        %v754 = vadd.f32 %v745, %v750
        %v755 = vmax.f32 %v751, 0.0
        %v756 = vmax.f32 %v752, 0.0
        %v757 = vmax.f32 %v753, 0.0
        %v758 = vmax.f32 %v754, 0.0
        %v759 = vpack.c.bf16 %v756, %v755
        %v760 = vpack.c.bf16 %v758, %v757
        %761 = vst [vmem:[%s325] sm:$0xff] %v759
        %762 = vst [vmem:[%s325 + $0x8] sm:$0xff] %v760
        %s763 = sand.u32 %s206, 1
        %s764 = scalar_lea.sflag [#allocation6], %s763
        %s765 = sand.u32 %s206, 1
        %s766 = smul.addr %s765, 16
        %s767 = scalar_lea.vmem [#allocation7], %s766
        // Predicated region
        $region64: #{tpu_custom_call.1} parent=51 // pred_check
          %p768 = pneg %p216
        $region65: #{tpu_custom_call.1} parent=51 // pred_check_branch
          %770 = sbr.rel (%p768) target = $region67
        $region66: #{tpu_custom_call.1} parent=51 // pred_region
          %772 = vsyncadd %s764, 0
          %s773 = smul.addr %s25, 4
          %s774 = smul.addr %s773, 4
          %s775 = scalar_lea.hbm %s8, %s774
          %s776 = sshll.u32 %s767, 4
          %s777 = int_to_ptr.vmem [resolvable:$true] %s776
          %s778 = sshll.u32 %s775, 4
          %s779 = int_to_ptr.hbm [resolvable:$true] %s778
          %784 = dma.vmem_to_hbm [thread:$0]  %s777, 256, %s779, %s764, 128, 128, 8
        $region67: #{tpu_custom_call.1} parent=51 // pred_fallthru
          _
      $region52: #{tpu_custom_call.1} parent=5 // pred_fallthru
        _
      %p785 = scmp.le.s32.totalorder 2, %s20
      // Predicated region
      $region68: #{tpu_custom_call.1} parent=5 // pred_check
        %p786 = pneg %p785
      $region69: #{tpu_custom_call.1} parent=5 // pred_check_branch
        %788 = sbr.rel (%p786) target = $region71
      $region70: #{tpu_custom_call.1} parent=5 // pred_region
        %s789 = ssub.s32 %s20, 2
        // Predicated region
        $region72: #{tpu_custom_call.1} parent=70 // pred_check
          %p790 = pneg %p222
        $region73: #{tpu_custom_call.1} parent=70 // pred_check_branch
          %792 = sbr.rel (%p790) target = $region75
        $region74: #{tpu_custom_call.1} parent=70 // pred_region
          %s793 = sand.u32 %s207, 1
          %s794 = scalar_lea.sflag [#allocation6], %s793
          %s795 = sand.u32 %s207, 1
          %s796 = smul.addr %s795, 16
          %s797 = scalar_lea.vmem [#allocation7], %s796
          %799 = dma.done %s794, 256
        $region75: #{tpu_custom_call.1} parent=70 // pred_fallthru
          _
      $region71: #{tpu_custom_call.1} parent=5 // pred_fallthru
        _
    $region6: #{tpu_custom_call.1} parent=1 // loop_footer
      %s24 = sadd.s32 1, %s20
    $region7: #{tpu_custom_call.1} parent=1 // loop_footer_branch
      %19 = sbr.rel target = $region3
    $region8: #{tpu_custom_call.1} parent=1 // loop_exit
      _
    %800 = vsyncpa [#allocation5], 1
    %s801 = scalar_lea.sflag [#allocation5], 1
    %802 = vsyncpa %s801, 1
    %803 = vsyncpa [#allocation6], 1
    %s804 = scalar_lea.sflag [#allocation6], 1
    %805 = vsyncpa %s804, 1

</llo_original>
